<compile_context>
chip_gen: v7x
topology: tpu7x:2x2x1
jax: 0.10.0
libtpu: 0.0.40
codegen_flags: <defaults>
</compile_context>

<pallas_src>
import functools

import jax
import jax.numpy as jnp
from jax import lax
from jax.experimental import pallas as pl
from jax.experimental.pallas import tpu as pltpu


# --------------------------------------------------------------------------------------
# pltpu.roll direction probe (robust across jax versions; cached, runs once).
# True  -> matches np.roll (elements move towards higher indices).
# --------------------------------------------------------------------------------------
@functools.lru_cache(maxsize=1)
def _roll_matches_numpy() -> bool:
    def _probe(x_ref, o_ref):
        o_ref[...] = pltpu.roll(x_ref[...], 1, axis=1)

    x = jnp.tile(jnp.arange(256, dtype=jnp.float32)[None, :], (8, 1))
    y = pl.pallas_call(_probe, out_shape=jax.ShapeDtypeStruct((8, 256), jnp.float32))(x)
    return bool(y[0, 0] == 255.0)


# --------------------------------------------------------------------------------------
# Pallas kernel: one block of nb images per grid step, channel-major (C, P) slabs.
# --------------------------------------------------------------------------------------
def _ghost_bottleneck_kernel(x_ref, p1_ref, p2_ref, o_ref, *,
                             C1, Cm1, Cm2, H, W, roll_np):
    nb, _, P = x_ref.shape                       # P = H*W (multiple of 128 -> lane-dense)

    # ---- unpack the two packed weight blocks (sliced once, stays in vregs) -------------
    p1 = p1_ref[...]                             # (Cm1, C1 + 25 + 2)
    w1_bf = p1[:, :C1].astype(jnp.bfloat16)                       # folded 1x1 conv
    wd1c = [p1[:, C1 + k:C1 + k + 1] for k in range(25)]          # 25 dw taps, (Cm1, 1)
    b1 = p1[:, C1 + 25:C1 + 26]
    bd1 = p1[:, C1 + 26:C1 + 27]

    p2 = p2_ref[...]                             # (Cm2, 2*Cm1 + 25 + 2)
    w2a_bf = p2[:, :Cm1].astype(jnp.bfloat16)                     # acts on y1
    w2b_bf = p2[:, Cm1:2 * Cm1].astype(jnp.bfloat16)              # acts on y2
    off = 2 * Cm1
    wd2c = [p2[:, off + k:off + k + 1] for k in range(25)]
    b2 = p2[:, off + 25:off + 26]
    bd2 = p2[:, off + 26:off + 27]

    # ---- boundary masks generated in-kernel from a lane iota (no mask operand / DMA) ---
    lane = lax.broadcasted_iota(jnp.int32, (1, P), 1)
    ww = lane % W
    hh = lane // W
    cmask = {o: ((ww + o >= 0) & (ww + o < W)).astype(jnp.float32) for o in (-2, -1, 1, 2)}
    rmask = {o: ((hh + o >= 0) & (hh + o < H)).astype(jnp.float32) for o in (-2, -1, 1, 2)}

    def _shift(a, delta):
        """shifted[p] = a[(p + delta) mod P]  (XLU lane rotation)."""
        s = (-delta) % P if roll_np else delta % P
        return pltpu.roll(a, s, axis=1)

    def dw5x5(a, wdc, bd):
        """5x5 'same' depthwise conv on channel-major (C, P), factorized stencil:
        4 shared horizontal rolls + column masks, 5 per-row weighted sums,
        4 vertical rolls + row masks  ->  8 rolls / 8 masks (was 24 / 24)."""
        a_kx = []
        for kx in range(5):
            ox = kx - 2
            a_kx.append(a if ox == 0 else _shift(a, ox) * cmask[ox])
        rows = []
        for ky in range(5):
            c = ky * 5
            r = ((a_kx[0] * wdc[c + 0] + a_kx[1] * wdc[c + 1])
                 + (a_kx[2] * wdc[c + 2] + a_kx[3] * wdc[c + 3])
                 + a_kx[4] * wdc[c + 4])
            oy = ky - 2
            if oy != 0:
                r = _shift(r, oy * W) * rmask[oy]
            rows.append(r)
        # tree accumulation: independent partial sums instead of a serial add chain
        return (rows[0] + rows[1]) + (rows[2] + rows[3]) + (rows[4] + bd)

    # ---- per-image compute (static unroll over the nb images of this grid step) --------
    for img in range(nb):
        x_bf = x_ref[img].astype(jnp.bfloat16)                    # (C1, P)

        # GhostConv(c1, c_): 1x1 conv + SiLU, then 5x5 depthwise + SiLU
        y1 = jnp.dot(w1_bf, x_bf, preferred_element_type=jnp.float32) + b1
        y1 = y1 * jax.nn.sigmoid(y1)                              # SiLU (EUP)
        y2 = dw5x5(y1, wd1c, bd1)
        y2 = y2 * jax.nn.sigmoid(y2)

        # GhostConv(c_, c2), no activation; concat avoided by splitting the 1x1 weight
        z1 = (jnp.dot(w2a_bf, y1.astype(jnp.bfloat16), preferred_element_type=jnp.float32)
              + jnp.dot(w2b_bf, y2.astype(jnp.bfloat16), preferred_element_type=jnp.float32)
              + b2)
        z2 = dw5x5(z1, wd2c, bd2)

        # out = cat([z1, z2], channel) + x   (identity shortcut, s == 1)
        xr = x_ref[img].astype(jnp.float32)      # re-read: don't hold x through dw loops
        o_ref[img, 0:Cm2, :] = (z1 + xr[0:Cm2, :]).astype(o_ref.dtype)
        o_ref[img, Cm2:2 * Cm2, :] = (z2 + xr[Cm2:2 * Cm2, :]).astype(o_ref.dtype)


def _default_images_per_step(N):
    """Single-TC chips (v5e/v6e): one big grid step (per-step overhead ~0.35us).
    v7x (2 TensorCores/chip): keep an even number of 'parallel' grid steps."""
    try:
        kind = jax.devices()[0].device_kind.lower()
    except Exception:
        kind = ""
    if "v7" in kind and N % 2 == 0:
        return N // 2
    return N


def ghost_bottleneck(x_nchw, params, *, images_per_step=None):
    """GhostBottleneck(c1, c2, k=3, s=1) forward.  x_nchw: (N, C1, H, W) float32.
    params = (p1, p2): packed, BN-folded weight blocks (see __main__)."""
    p1, p2 = params
    N, C1, H, W = x_nchw.shape
    Cm1 = p1.shape[0]
    Cm2 = p2.shape[0]
    C2 = 2 * Cm2
    assert C1 == C2, "identity shortcut (s == 1) requires c1 == c2"
    P = H * W
    assert P % 128 == 0, "H*W must be a multiple of 128 for lane-dense blocks"

    nb = images_per_step if images_per_step else _default_images_per_step(N)
    if N % nb != 0:
        nb = 1                                   # graceful fallback
    G = N // nb

    x_blk = x_nchw.reshape(G, nb, C1, P)         # free reshape, no HBM transpose

    kernel = functools.partial(_ghost_bottleneck_kernel, C1=C1, Cm1=Cm1, Cm2=Cm2,
                               H=H, W=W, roll_np=_roll_matches_numpy())

    flops = int(N * P * (2 * Cm1 * C1 + 4 * Cm1 * Cm2 + 2 * 25 * (Cm1 + Cm2)))
    transcendentals = int(2 * N * P * Cm1)
    bytes_accessed = int(4 * (N * P * (C1 + C2) + p1.size + p2.size))

    out_blk = pl.pallas_call(
        kernel,
        out_shape=jax.ShapeDtypeStruct((G, nb, C2, P), x_nchw.dtype),
        grid_spec=pltpu.PrefetchScalarGridSpec(
            num_scalar_prefetch=0,
            grid=(G,),
            in_specs=[
                pl.BlockSpec((None, nb, C1, P), lambda g: (g, 0, 0, 0)),  # image block
                pl.BlockSpec(p1.shape, lambda g: (0, 0)),                 # packed weights
                pl.BlockSpec(p2.shape, lambda g: (0, 0)),
            ],
            out_specs=pl.BlockSpec((None, nb, C2, P), lambda g: (g, 0, 0, 0)),
        ),
        compiler_params=pltpu.CompilerParams(dimension_semantics=("parallel",)),
        cost_estimate=pl.CostEstimate(flops=flops, transcendentals=transcendentals,
                                      bytes_accessed=bytes_accessed),
    )(x_blk, p1, p2)

    return out_blk.reshape(N, C2, H, W)          # free reshape back to NCHW


# --------------------------------------------------------------------------------------
# Deterministic parameter construction + BN folding (plain-JAX glue)
# --------------------------------------------------------------------------------------
_EPS = 1e-5


def make_convmodule_params(key, cin, cout, k, groups):
    kw, kg, kb, km, kv = jax.random.split(key, 5)
    return dict(
        w=jax.random.normal(kw, (cout, cin // groups, k, k), jnp.float32) * 0.1,
        gamma=1.0 + 0.1 * jax.random.normal(kg, (cout,), jnp.float32),
        beta=0.1 * jax.random.normal(kb, (cout,), jnp.float32),
        mean=0.1 * jax.random.normal(km, (cout,), jnp.float32),
        var=jnp.abs(jax.random.normal(kv, (cout,), jnp.float32)) * 0.5 + 0.5,
    )


def fold_bn(p):
    scale = p['gamma'] / jnp.sqrt(p['var'] + _EPS)
    w = p['w'] * scale[:, None, None, None]
    b = p['beta'] - p['mean'] * scale
    return w, b


# --------------------------------------------------------------------------------------
# Pure-JAX reference (mirrors PyTorch NCHW semantics) for correctness check
# --------------------------------------------------------------------------------------
def conv_bn_ref(x, p, groups, pad, act):
    y = lax.conv_general_dilated(
        x, p['w'], (1, 1), [(pad, pad), (pad, pad)],
        dimension_numbers=('NCHW', 'OIHW', 'NCHW'),
        feature_group_count=groups, precision=lax.Precision.HIGHEST)
    scale = p['gamma'] / jnp.sqrt(p['var'] + _EPS)
    y = y * scale[None, :, None, None] + (p['beta'] - p['mean'] * scale)[None, :, None, None]
    if act:
        y = y * jax.nn.sigmoid(y)
    return y


def ghost_bottleneck_ref(x_nchw, p_gc1a, p_gc1d, p_gc2a, p_gc2d):
    y1 = conv_bn_ref(x_nchw, p_gc1a, 1, 0, True)                  # GhostConv1.cv1 (SiLU)
    y2 = conv_bn_ref(y1, p_gc1d, y1.shape[1], 2, True)            # GhostConv1.cv2 (SiLU)
    h = jnp.concatenate([y1, y2], axis=1)
    z1 = conv_bn_ref(h, p_gc2a, 1, 0, False)                      # GhostConv2.cv1 (no act)
    z2 = conv_bn_ref(z1, p_gc2d, z1.shape[1], 2, False)           # GhostConv2.cv2 (no act)
    return jnp.concatenate([z1, z2], axis=1) + x_nchw             # identity shortcut (s=1)


if __name__ == "__main__":
    key = jax.random.PRNGKey(0)
    c1 = c2 = 16                      # residual requires c1 == c2 when s == 1
    c_ = c2 // 2                      # 8
    N, H, W = 4, 16, 16

    k_x, k1, k2, k3, k4 = jax.random.split(key, 5)
    x_nchw = jax.random.normal(k_x, (N, c1, H, W), jnp.float32)

    # GhostBottleneck(16, 16, k=3, s=1) parameters
    p_gc1a = make_convmodule_params(k1, c1, c_ // 2, 1, 1)              # GhostConv(c1, c_).cv1
    p_gc1d = make_convmodule_params(k2, c_ // 2, c_ // 2, 5, c_ // 2)   # GhostConv(c1, c_).cv2
    p_gc2a = make_convmodule_params(k3, c_, c2 // 2, 1, 1)              # GhostConv(c_, c2).cv1
    p_gc2d = make_convmodule_params(k4, c2 // 2, c2 // 2, 5, c2 // 2)   # GhostConv(c_, c2).cv2

    # Fold BN into conv weights and pack into the two kernel weight blocks
    Cm1 = c_ // 2                                                       # 4
    Cm2 = c2 // 2                                                       # 8
    w1f, b1 = fold_bn(p_gc1a);  w1t = w1f[:, :, 0, 0]                   # (Cm1, C1)
    wd1f, bd1 = fold_bn(p_gc1d); wd1 = wd1f[:, 0].reshape(Cm1, 25)      # col = ky*5+kx
    w2f, b2 = fold_bn(p_gc2a)
    w2a = w2f[:, :Cm1, 0, 0]                                            # (Cm2, Cm1) for y1
    w2b = w2f[:, Cm1:, 0, 0]                                            # (Cm2, Cm1) for y2
    wd2f, bd2 = fold_bn(p_gc2d); wd2 = wd2f[:, 0].reshape(Cm2, 25)

    p1 = jnp.concatenate([w1t, wd1, b1[:, None], bd1[:, None]], axis=1)        # (Cm1, 43)
    p2 = jnp.concatenate([w2a, w2b, wd2, b2[:, None], bd2[:, None]], axis=1)   # (Cm2, 35)

    out_nchw = ghost_bottleneck(x_nchw, (p1, p2))
    out_nchw = jax.block_until_ready(out_nchw)

    ref = ghost_bottleneck_ref(x_nchw, p_gc1a, p_gc1d, p_gc2a, p_gc2d)
    err = float(jnp.max(jnp.abs(out_nchw - ref)))
    # single-pass bf16 MXU matmuls in the kernel vs. a HIGHEST-precision f32 reference
    assert jnp.allclose(out_nchw, ref, atol=1e-2, rtol=1e-2), f"max abs err = {err}"
    print("KERNEL_OK")
</pallas_src>

<mosaic_0001>
module attributes {stable_mosaic.version = 11 : i64} {
  func.func @_probe(%arg0: memref<8x256xf32, #tpu.memory_space<vmem>>, %arg1: memref<8x256xf32, #tpu.memory_space<vmem>>) attributes {dimension_semantics = [], scalar_prefetch = 0 : i64, scratch_operands = 0 : i64, tpu.core_type = #tpu.core_type<tc>} {
    %c0 = arith.constant 0 : index
    %c0_0 = arith.constant 0 : index
    %0 = vector.load %arg0[%c0, %c0_0] : memref<8x256xf32, #tpu.memory_space<vmem>>, vector<8x256xf32>
    %c1_i32 = arith.constant 1 : i32
    %1 = tpu.dynamic_rotate %0 by %c1_i32 dim 1 : vector<8x256xf32>, i32 -> vector<8x256xf32>
    %c0_1 = arith.constant 0 : index
    %c0_2 = arith.constant 0 : index
    %2 = vector.load %arg1[%c0_1, %c0_2] : memref<8x256xf32, #tpu.memory_space<vmem>>, vector<8x256xf32>
    tpu.vector_store %arg1[%c0_1, %c0_2], %1 {strides = array<i32>} : memref<8x256xf32, #tpu.memory_space<vmem>>, vector<8x256xf32>,
    return
  }
}

</mosaic_0001>

<llo_original>
// kernel: tpu_custom_call.1
$region0: #{tpu_custom_call.1}
  #allocation0 [shape = 'u32[]', space=smem, size = 0x4, offset = 0x4, fixed_abs, tag = 'smem constant byte address 0x4 - core index']
  #allocation1 [shape = 'u32[144,128]{1,0:T(1,128)}', space=vmem, size = 0x12000, scoped, tag = 'internal scratch']
  %s0 = inlined_call_operand.hbm [shape: f32[8,256], index: 0, kind: input, shape index: {}]
  %s1 = inlined_call_operand.hbm [shape: f32[8,256], index: 1, kind: output, shape index: {}]
  %s2 = sld [smem:[#allocation0]]
  $region18: #{tpu_custom_call.1} parent=0
    _
  %s4 = ssub.s32 1, %s2
  %s5 = scalar_select 0, %s4, %s2
  $region1: #{tpu_custom_call.1} parent=0
    #allocation2 [shape = 'u8[8192]{0}', space=vmem, size = 0x2000, scoped, tag = 'input window, operand 0, single buffered']
    #allocation3 [shape = 's32[1]{0}', space=sflag, size = 0x4, scoped, tag = 'scoped memory for tpu_custom_call.1']
    #allocation4 [shape = 's32[1]{0}', space=sflag, size = 0x4, scoped, tag = 'scoped memory for tpu_custom_call.1']
    #allocation5 [shape = 'u8[8192]{0}', space=vmem, size = 0x2000, scoped, tag = 'output window, operand 0, single buffered']
    %6 = vsyncpa [#allocation3], 0
    %7 = vsyncpa [#allocation4], 0
    // Predicated region
    $region2: #{tpu_custom_call.1} parent=1 // pred_check
      _
    $region3: #{tpu_custom_call.1} parent=1 // pred_check_branch
      %9 = sbr.rel (0) target = $region5
    $region4: #{tpu_custom_call.1} parent=1 // pred_region
      %s11 = ssub.s32 256, 256
      %12 = vsyncadd [#allocation3], %s11
      %s14 = sshll.u32 [#allocation2], 4
      %s15 = int_to_ptr.vmem [resolvable:$true] %s14
      %17 = dma.hbm_to_vmem [thread:$0]  %s0, 256, %s15, [#allocation3]
    $region5: #{tpu_custom_call.1} parent=1 // pred_fallthru
      _
    // Predicated region
    $region6: #{tpu_custom_call.1} parent=1 // pred_check
      _
    $region7: #{tpu_custom_call.1} parent=1 // pred_check_branch
      %19 = sbr.rel (0) target = $region9
    $region8: #{tpu_custom_call.1} parent=1 // pred_region
      %20 = dma.done [#allocation3], 256
    $region9: #{tpu_custom_call.1} parent=1 // pred_fallthru
      _
    %v21 = vld [vmem:[#allocation2] sm:$0xff]
    %v22 = vld [vmem:[#allocation2 + $0x8] sm:$0xff]
    %23 = vrot.lane.b32.xlu0 %v21, 1
    %v24 = vpop.permute.xlu0 %23
    %25 = vrot.lane.b32.xlu0 %v22, 1
    %v26 = vpop.permute.xlu0 %25
    %v27 = vlaneseq
    %v28 = vand.u32 %v27, 127
    %vm29 = vcmp.lt.s32.totalorder %v28, 1
    %v30 = vsel %vm29, %v24, %v26
    %v31 = vsel %vm29, %v26, %v24
    %32 = vst [vmem:[#allocation5] sm:$0xff] %v31
    %33 = vst [vmem:[#allocation5 + $0x8] sm:$0xff] %v30
    // Predicated region
    $region10: #{tpu_custom_call.1} parent=1 // pred_check
      _
    $region11: #{tpu_custom_call.1} parent=1 // pred_check_branch
      %35 = sbr.rel (0) target = $region13
    $region12: #{tpu_custom_call.1} parent=1 // pred_region
      %s37 = ssub.s32 256, 256
      %38 = vsyncadd [#allocation4], %s37
      %s40 = sshll.u32 [#allocation5], 4
      %s41 = int_to_ptr.vmem [resolvable:$true] %s40
      %43 = dma.vmem_to_hbm [thread:$0]  %s41, 256, %s1, [#allocation4]
    $region13: #{tpu_custom_call.1} parent=1 // pred_fallthru
      _
    // Predicated region
    $region14: #{tpu_custom_call.1} parent=1 // pred_check
      _
    $region15: #{tpu_custom_call.1} parent=1 // pred_check_branch
      %45 = sbr.rel (0) target = $region17
    $region16: #{tpu_custom_call.1} parent=1 // pred_region
      %46 = dma.done [#allocation4], 256
    $region17: #{tpu_custom_call.1} parent=1 // pred_fallthru
      _
    %47 = vsyncpa [#allocation3], 1
    %48 = vsyncpa [#allocation4], 1

</llo_original>
